<compile_context>
chip_gen: v7x
topology: tpu7x:2x2x1
jax: 0.10.0
libtpu: 0.0.40
codegen_flags: <defaults>
</compile_context>

<pallas_src>
import functools

import jax
import jax.numpy as jnp
import numpy as np
from jax.experimental import pallas as pl
from jax.experimental.pallas import tpu as pltpu


def _round_up(x, n):
    return ((x + n - 1) // n) * n


def _fused_ensemble_kernel(x_ref, w_ref, b_ref, o_ref, *, n_models, out_pad):
    # One wide matmul for the whole ensemble:
    #   [bm, in_dim] @ [in_dim, n_models * out_pad]   (f32 accumulation on MXU)
    logits = (
        jnp.dot(x_ref[...], w_ref[...], preferred_element_type=jnp.float32)
        + b_ref[...]
    )

    # Per-model softmax on lane-aligned (128-multiple) column blocks, then mean.
    # n_models / out_pad are trace-time constants -> fully unrolled static slices.
    acc = None
    for m in range(n_models):
        lg = logits[:, m * out_pad:(m + 1) * out_pad]
        lg = lg - jnp.max(lg, axis=-1, keepdims=True)
        e = jnp.exp(lg)
        # EUP reciprocal keeps the divide off the VALU critical path.
        p = e * pl.reciprocal(jnp.sum(e, axis=-1, keepdims=True), approx=True)
        acc = p if acc is None else acc + p

    o_ref[...] = (acc * (1.0 / n_models)).astype(o_ref.dtype)


def fused_model_forward(x, W, B, *, bm=None, compute_dtype=jnp.bfloat16,
                        lane_pad=True):
    """Forward of FusedModel: mean_m softmax(x @ W[m] + B[m]).

    x: [batch, in_dim] f32
    W: [n_models, in_dim, out_dim] f32
    B: [n_models, 1, out_dim] f32
    returns: [batch, out_dim] f32
    """
    batch, in_dim = x.shape
    n_models, _, out_dim = W.shape

    # ---- wrapper-side layout: flatten ensemble into one wide RHS, lane-pad ----
    out_pad = _round_up(out_dim, 128) if lane_pad else out_dim
    wide = n_models * out_pad

    W_cols = jnp.transpose(W, (1, 0, 2))                    # [in_dim, M, out_dim]
    if out_pad != out_dim:
        # zero weight columns + -1e30 bias => exp() == 0 for the padded classes.
        W_cols = jnp.pad(W_cols, ((0, 0), (0, 0), (0, out_pad - out_dim)))
        B_pad = jnp.pad(B, ((0, 0), (0, 0), (0, out_pad - out_dim)),
                        constant_values=-1e30)
    else:
        B_pad = B
    W_flat = W_cols.reshape(in_dim, wide)
    B_flat = B_pad.reshape(1, wide).astype(jnp.float32)     # bias stays f32

    # Wrapper-side compute-dtype cast (bf16 default): halves W DMA / VMEM bytes,
    # no per-grid-step VPU cast inside the kernel.  Accumulation stays f32.
    if compute_dtype is not None:
        x = x.astype(compute_dtype)
        W_flat = W_flat.astype(compute_dtype)

    # ---- batch tiling: >=2 grid steps when batch > 128 (v7x megacore),
    #      up to 512-row tiles to amortize per-step overhead -------------------
    if bm is None:
        bm = batch if batch <= 128 else min(512, _round_up(pl.cdiv(batch, 2), 8))
    grid = (pl.cdiv(batch, bm),)

    # VMEM budget: resident W/B (single-buffered) + double-buffered x/out tiles.
    itemsize = jnp.dtype(compute_dtype if compute_dtype is not None else x.dtype).itemsize
    est = (in_dim * wide * itemsize + wide * 4
           + 2 * bm * in_dim * itemsize + 2 * bm * out_pad * 4)
    vmem_limit = int(min(100 * 2**20, max(32 * 2**20, 2 * est)))

    kernel = functools.partial(_fused_ensemble_kernel,
                               n_models=n_models, out_pad=out_pad)

    # TODO(synk): for production shapes where in_dim or n_models*out_pad makes
    # W_flat exceed ~20-30 MiB (esp. v7x's 64 MiB VMEM), add a K ('arbitrary')
    # grid axis with an f32 logits accumulator and/or tile the wide-N axis per
    # model group instead of keeping all weights resident.

    def run(single_buffer_weights):
        # Grid-invariant W/B: single-buffer (default pipelining would double-
        # buffer the largest resident allocation for zero benefit).
        wb_kwargs = ({"pipeline_mode": pl.Buffered(1)}
                     if single_buffer_weights else {})
        out = pl.pallas_call(
            kernel,
            out_shape=jax.ShapeDtypeStruct((batch, out_pad), jnp.float32),
            grid=grid,
            in_specs=[
                pl.BlockSpec((bm, in_dim), lambda i: (i, 0)),        # x batch tile
                pl.BlockSpec((in_dim, wide), lambda i: (0, 0), **wb_kwargs),
                pl.BlockSpec((1, wide), lambda i: (0, 0), **wb_kwargs),
            ],
            out_specs=pl.BlockSpec((bm, out_pad), lambda i: (i, 0)),  # lane-dense
            compiler_params=pltpu.CompilerParams(
                dimension_semantics=("parallel",),
                vmem_limit_bytes=vmem_limit,
            ),
        )(x, W_flat, B_flat)
        return out[:, :out_dim] if out_pad != out_dim else out

    try:
        return run(single_buffer_weights=True)
    except Exception:
        # Some jax/libtpu builds reject buffer_count=1; fall back to default
        # double-buffered pipelining (correctness identical).
        return run(single_buffer_weights=False)


def _reference(x, W, B):
    """Pure-JAX reference matching PyTorch FusedModel.forward semantics."""
    acc = jnp.zeros((x.shape[0], W.shape[-1]), jnp.float32)
    for m in range(W.shape[0]):
        logits = x @ W[m] + B[m, 0]
        acc = acc + jax.nn.softmax(logits, axis=1)
    return acc / W.shape[0]


if __name__ == "__main__":
    # Small shapes consistent with the module: each sub-model is Linear(in_dim, out_dim).
    batch, in_dim, out_dim, n_models = 8, 32, 10, 3

    key = jax.random.PRNGKey(0)
    kx, kw, kb = jax.random.split(key, 3)
    x = jax.random.normal(kx, (batch, in_dim), dtype=jnp.float32)
    W = jax.random.normal(kw, (n_models, in_dim, out_dim), dtype=jnp.float32) * 0.1
    B = jax.random.normal(kb, (n_models, 1, out_dim), dtype=jnp.float32) * 0.1

    ref = _reference(x, W, B)

    # f32 MXU path (exact up to the EUP approx-reciprocal in softmax).
    out_f32 = jax.block_until_ready(fused_model_forward(x, W, B, compute_dtype=None))
    np.testing.assert_allclose(np.asarray(out_f32), np.asarray(ref),
                               rtol=1e-3, atol=1e-3)

    # bf16 weights/activations path (production default; f32 accumulation).
    out_bf16 = jax.block_until_ready(fused_model_forward(x, W, B))
    np.testing.assert_allclose(np.asarray(out_bf16), np.asarray(ref),
                               rtol=2e-2, atol=2e-2)

    print("KERNEL_OK")
</pallas_src>

<mosaic_0001>
module attributes {stable_mosaic.version = 11 : i64} {
  func.func @_fused_ensemble_kernel(%arg0: i32, %arg1: memref<8x32xf32, #tpu.memory_space<vmem>>, %arg2: memref<32x384xf32, #tpu.memory_space<vmem>>, %arg3: memref<1x384xf32, #tpu.memory_space<vmem>>, %arg4: memref<8x128xf32, #tpu.memory_space<vmem>>) attributes {dimension_semantics = [#tpu.dimension_semantics<parallel>], iteration_bounds = array<i64: 1>, scalar_prefetch = 0 : i64, scratch_operands = 0 : i64, tpu.core_type = #tpu.core_type<tc>, window_params = [{transform_indices = @transform_0, window_bounds = array<i64: 8, 32>}, {pipeline_mode = #tpu.pipeline_mode<synchronous>, transform_indices = @transform_1, window_bounds = array<i64: 32, 384>}, {pipeline_mode = #tpu.pipeline_mode<synchronous>, transform_indices = @transform_2, window_bounds = array<i64: 1, 384>}, {transform_indices = @transform_3, window_bounds = array<i64: 8, 128>}]} {
    %c0 = arith.constant 0 : index
    %c0_0 = arith.constant 0 : index
    %0 = vector.load %arg1[%c0, %c0_0] : memref<8x32xf32, #tpu.memory_space<vmem>>, vector<8x32xf32>
    %c0_1 = arith.constant 0 : index
    %c0_2 = arith.constant 0 : index
    %1 = vector.load %arg2[%c0_1, %c0_2] : memref<32x384xf32, #tpu.memory_space<vmem>>, vector<32x384xf32>
    %cst = arith.constant dense<0.000000e+00> : vector<8x384xf32>
    %2 = tpu.matmul %0, %1, %cst {dimension_numbers = #tpu.dot_dimension_numbers<[1], [0], [0], [1], [0, 0, 1, 1], [], []>} : vector<8x32xf32>, vector<32x384xf32>, vector<8x384xf32> -> vector<8x384xf32>
    %c0_3 = arith.constant 0 : index
    %c0_4 = arith.constant 0 : index
    %3 = vector.load %arg3[%c0_3, %c0_4] : memref<1x384xf32, #tpu.memory_space<vmem>>, vector<1x384xf32>
    %4 = vector.broadcast %3 : vector<1x384xf32> to vector<8x384xf32>
    %5 = arith.addf %2, %4 : vector<8x384xf32>
    %6 = vector.extract_strided_slice %5 {offsets = [0, 0], sizes = [8, 128], strides = [1, 1]} : vector<8x384xf32> to vector<8x128xf32>
    %cst_5 = arith.constant dense<0xFF800000> : vector<8xf32>
    %7 = vector.multi_reduction <maximumf>, %6, %cst_5 [1] : vector<8x128xf32> to vector<8xf32>
    %8 = vector.shape_cast %7 : vector<8xf32> to vector<8x1xf32>
    %9 = vector.broadcast %8 : vector<8x1xf32> to vector<8x128xf32>
    %10 = arith.subf %6, %9 : vector<8x128xf32>
    %11 = math.exp %10 : vector<8x128xf32>
    %cst_6 = arith.constant dense<0.000000e+00> : vector<8xf32>
    %12 = vector.multi_reduction <add>, %11, %cst_6 [1] : vector<8x128xf32> to vector<8xf32>
    %13 = vector.shape_cast %12 : vector<8xf32> to vector<8x1xf32>
    %14 = tpu.reciprocal %13 {approx = true} : vector<8x1xf32> -> vector<8x1xf32>
    %15 = vector.broadcast %14 : vector<8x1xf32> to vector<8x128xf32>
    %16 = arith.mulf %11, %15 : vector<8x128xf32>
    %17 = vector.extract_strided_slice %5 {offsets = [0, 128], sizes = [8, 128], strides = [1, 1]} : vector<8x384xf32> to vector<8x128xf32>
    %cst_7 = arith.constant dense<0xFF800000> : vector<8xf32>
    %18 = vector.multi_reduction <maximumf>, %17, %cst_7 [1] : vector<8x128xf32> to vector<8xf32>
    %19 = vector.shape_cast %18 : vector<8xf32> to vector<8x1xf32>
    %20 = vector.broadcast %19 : vector<8x1xf32> to vector<8x128xf32>
    %21 = arith.subf %17, %20 : vector<8x128xf32>
    %22 = math.exp %21 : vector<8x128xf32>
    %cst_8 = arith.constant dense<0.000000e+00> : vector<8xf32>
    %23 = vector.multi_reduction <add>, %22, %cst_8 [1] : vector<8x128xf32> to vector<8xf32>
    %24 = vector.shape_cast %23 : vector<8xf32> to vector<8x1xf32>
    %25 = tpu.reciprocal %24 {approx = true} : vector<8x1xf32> -> vector<8x1xf32>
    %26 = vector.broadcast %25 : vector<8x1xf32> to vector<8x128xf32>
    %27 = arith.mulf %22, %26 : vector<8x128xf32>
    %28 = arith.addf %16, %27 : vector<8x128xf32>
    %29 = vector.extract_strided_slice %5 {offsets = [0, 256], sizes = [8, 128], strides = [1, 1]} : vector<8x384xf32> to vector<8x128xf32>
    %cst_9 = arith.constant dense<0xFF800000> : vector<8xf32>
    %30 = vector.multi_reduction <maximumf>, %29, %cst_9 [1] : vector<8x128xf32> to vector<8xf32>
    %31 = vector.shape_cast %30 : vector<8xf32> to vector<8x1xf32>
    %32 = vector.broadcast %31 : vector<8x1xf32> to vector<8x128xf32>
    %33 = arith.subf %29, %32 : vector<8x128xf32>
    %34 = math.exp %33 : vector<8x128xf32>
    %cst_10 = arith.constant dense<0.000000e+00> : vector<8xf32>
    %35 = vector.multi_reduction <add>, %34, %cst_10 [1] : vector<8x128xf32> to vector<8xf32>
    %36 = vector.shape_cast %35 : vector<8xf32> to vector<8x1xf32>
    %37 = tpu.reciprocal %36 {approx = true} : vector<8x1xf32> -> vector<8x1xf32>
    %38 = vector.broadcast %37 : vector<8x1xf32> to vector<8x128xf32>
    %39 = arith.mulf %34, %38 : vector<8x128xf32>
    %40 = arith.addf %28, %39 : vector<8x128xf32>
    %cst_11 = arith.constant 0.333333343 : f32
    %41 = vector.broadcast %cst_11 : f32 to vector<8x128xf32>
    %42 = arith.mulf %40, %41 : vector<8x128xf32>
    %c0_12 = arith.constant 0 : index
    %c0_13 = arith.constant 0 : index
    %43 = vector.load %arg4[%c0_12, %c0_13] : memref<8x128xf32, #tpu.memory_space<vmem>>, vector<8x128xf32>
    tpu.vector_store %arg4[%c0_12, %c0_13], %42 {strides = array<i32>} : memref<8x128xf32, #tpu.memory_space<vmem>>, vector<8x128xf32>,
    return
  }
  func.func @transform_0(%arg0: i32) -> (i32, i32) {
    %c0_i32 = arith.constant 0 : i32
    %c0_i32_0 = arith.constant 0 : i32
    return %arg0, %c0_i32 : i32, i32
  }
  func.func @transform_1(%arg0: i32) -> (i32, i32) {
    %c0_i32 = arith.constant 0 : i32
    %c0_i32_0 = arith.constant 0 : i32
    %c0_i32_1 = arith.constant 0 : i32
    return %c0_i32, %c0_i32_0 : i32, i32
  }
  func.func @transform_2(%arg0: i32) -> (i32, i32) {
    %c0_i32 = arith.constant 0 : i32
    %c0_i32_0 = arith.constant 0 : i32
    %c0_i32_1 = arith.constant 0 : i32
    return %c0_i32, %c0_i32_0 : i32, i32
  }
  func.func @transform_3(%arg0: i32) -> (i32, i32) {
    %c0_i32 = arith.constant 0 : i32
    %c0_i32_0 = arith.constant 0 : i32
    return %arg0, %c0_i32 : i32, i32
  }
}

module attributes {stable_mosaic.version = 11 : i64} {
  func.func @_fused_ensemble_kernel(%arg0: i32, %arg1: memref<8x32xf32, #tpu.memory_space<vmem>>, %arg2: memref<32x384xf32, #tpu.memory_space<vmem>>, %arg3: memref<1x384xf32, #tpu.memory_space<vmem>>, %arg4: memref<8x128xf32, #tpu.memory_space<vmem>>) attributes {dimension_semantics = [#tpu.dimension_semantics<parallel>], iteration_bounds = array<i64: 1>, scalar_prefetch = 0 : i64, scratch_operands = 0 : i64, tpu.core_type = #tpu.core_type<tc>, window_params = [{transform_indices = @transform_0, window_bounds = array<i64: 8, 32>}, {pipeline_mode = #tpu.pipeline_mode<synchronous>, transform_indices = @transform_1, window_bounds = array<i64: 32, 384>}, {pipeline_mode = #tpu.pipeline_mode<synchronous>, transform_indices = @transform_2, window_bounds = array<i64: 1, 384>}, {transform_indices = @transform_3, window_bounds = array<i64: 8, 128>}]} {
    %c0 = arith.constant 0 : index
    %c0_0 = arith.constant 0 : index
    %0 = vector.load %arg1[%c0, %c0_0] : memref<8x32xf32, #tpu.memory_space<vmem>>, vector<8x32xf32>
    %c0_1 = arith.constant 0 : index
    %c0_2 = arith.constant 0 : index
    %1 = vector.load %arg2[%c0_1, %c0_2] : memref<32x384xf32, #tpu.memory_space<vmem>>, vector<32x384xf32>
    %cst = arith.constant dense<0.000000e+00> : vector<8x384xf32>
    %2 = tpu.matmul %0, %1, %cst {dimension_numbers = #tpu.dot_dimension_numbers<[1], [0], [0], [1], [0, 0, 1, 1], [], []>} : vector<8x32xf32>, vector<32x384xf32>, vector<8x384xf32> -> vector<8x384xf32>
    %c0_3 = arith.constant 0 : index
    %c0_4 = arith.constant 0 : index
    %3 = vector.load %arg3[%c0_3, %c0_4] : memref<1x384xf32, #tpu.memory_space<vmem>>, vector<1x384xf32>
    %4 = vector.broadcast %3 : vector<1x384xf32> to vector<8x384xf32>
    %5 = arith.addf %2, %4 : vector<8x384xf32>
    %6 = vector.extract_strided_slice %5 {offsets = [0, 0], sizes = [8, 128], strides = [1, 1]} : vector<8x384xf32> to vector<8x128xf32>
    %cst_5 = arith.constant dense<0xFF800000> : vector<8xf32>
    %7 = vector.multi_reduction <maximumf>, %6, %cst_5 [1] : vector<8x128xf32> to vector<8xf32>
    %8 = vector.shape_cast %7 : vector<8xf32> to vector<8x1xf32>
    %9 = vector.broadcast %8 : vector<8x1xf32> to vector<8x128xf32>
    %10 = arith.subf %6, %9 : vector<8x128xf32>
    %11 = math.exp %10 : vector<8x128xf32>
    %cst_6 = arith.constant dense<0.000000e+00> : vector<8xf32>
    %12 = vector.multi_reduction <add>, %11, %cst_6 [1] : vector<8x128xf32> to vector<8xf32>
    %13 = vector.shape_cast %12 : vector<8xf32> to vector<8x1xf32>
    %14 = tpu.reciprocal %13 {approx = true} : vector<8x1xf32> -> vector<8x1xf32>
    %15 = vector.broadcast %14 : vector<8x1xf32> to vector<8x128xf32>
    %16 = arith.mulf %11, %15 : vector<8x128xf32>
    %17 = vector.extract_strided_slice %5 {offsets = [0, 128], sizes = [8, 128], strides = [1, 1]} : vector<8x384xf32> to vector<8x128xf32>
    %cst_7 = arith.constant dense<0xFF800000> : vector<8xf32>
    %18 = vector.multi_reduction <maximumf>, %17, %cst_7 [1] : vector<8x128xf32> to vector<8xf32>
    %19 = vector.shape_cast %18 : vector<8xf32> to vector<8x1xf32>
    %20 = vector.broadcast %19 : vector<8x1xf32> to vector<8x128xf32>
    %21 = arith.subf %17, %20 : vector<8x128xf32>
    %22 = math.exp %21 : vector<8x128xf32>
    %cst_8 = arith.constant dense<0.000000e+00> : vector<8xf32>
    %23 = vector.multi_reduction <add>, %22, %cst_8 [1] : vector<8x128xf32> to vector<8xf32>
    %24 = vector.shape_cast %23 : vector<8xf32> to vector<8x1xf32>
    %25 = tpu.reciprocal %24 {approx = true} : vector<8x1xf32> -> vector<8x1xf32>
    %26 = vector.broadcast %25 : vector<8x1xf32> to vector<8x128xf32>
    %27 = arith.mulf %22, %26 : vector<8x128xf32>
    %28 = arith.addf %16, %27 : vector<8x128xf32>
    %29 = vector.extract_strided_slice %5 {offsets = [0, 256], sizes = [8, 128], strides = [1, 1]} : vector<8x384xf32> to vector<8x128xf32>
    %cst_9 = arith.constant dense<0xFF800000> : vector<8xf32>
    %30 = vector.multi_reduction <maximumf>, %29, %cst_9 [1] : vector<8x128xf32> to vector<8xf32>
    %31 = vector.shape_cast %30 : vector<8xf32> to vector<8x1xf32>
    %32 = vector.broadcast %31 : vector<8x1xf32> to vector<8x128xf32>
    %33 = arith.subf %29, %32 : vector<8x128xf32>
    %34 = math.exp %33 : vector<8x128xf32>
    %cst_10 = arith.constant dense<0.000000e+00> : vector<8xf32>
    %35 = vector.multi_reduction <add>, %34, %cst_10 [1] : vector<8x128xf32> to vector<8xf32>
    %36 = vector.shape_cast %35 : vector<8xf32> to vector<8x1xf32>
    %37 = tpu.reciprocal %36 {approx = true} : vector<8x1xf32> -> vector<8x1xf32>
    %38 = vector.broadcast %37 : vector<8x1xf32> to vector<8x128xf32>
    %39 = arith.mulf %34, %38 : vector<8x128xf32>
    %40 = arith.addf %28, %39 : vector<8x128xf32>
    %cst_11 = arith.constant 0.333333343 : f32
    %41 = vector.broadcast %cst_11 : f32 to vector<8x128xf32>
    %42 = arith.mulf %40, %41 : vector<8x128xf32>
    %c0_12 = arith.constant 0 : index
    %c0_13 = arith.constant 0 : index
    %43 = vector.load %arg4[%c0_12, %c0_13] : memref<8x128xf32, #tpu.memory_space<vmem>>, vector<8x128xf32>
    tpu.vector_store %arg4[%c0_12, %c0_13], %42 {strides = array<i32>} : memref<8x128xf32, #tpu.memory_space<vmem>>, vector<8x128xf32>,
    return
  }
  func.func @transform_0(%arg0: i32) -> (i32, i32) {
    %c0_i32 = arith.constant 0 : i32
    %c0_i32_0 = arith.constant 0 : i32
    return %arg0, %c0_i32 : i32, i32
  }
  func.func @transform_1(%arg0: i32) -> (i32, i32) {
    %c0_i32 = arith.constant 0 : i32
    %c0_i32_0 = arith.constant 0 : i32
    %c0_i32_1 = arith.constant 0 : i32
    return %c0_i32, %c0_i32_0 : i32, i32
  }
  func.func @transform_2(%arg0: i32) -> (i32, i32) {
    %c0_i32 = arith.constant 0 : i32
    %c0_i32_0 = arith.constant 0 : i32
    %c0_i32_1 = arith.constant 0 : i32
    return %c0_i32, %c0_i32_0 : i32, i32
  }
  func.func @transform_3(%arg0: i32) -> (i32, i32) {
    %c0_i32 = arith.constant 0 : i32
    %c0_i32_0 = arith.constant 0 : i32
    return %arg0, %c0_i32 : i32, i32
  }
}

</mosaic_0001>

<llo_original>
// kernel: tpu_custom_call.1
$region0: #{tpu_custom_call.1}
  #allocation0 [shape = 'u32[]', space=smem, size = 0x4, offset = 0x4, fixed_abs, tag = 'smem constant byte address 0x4 - core index']
  #allocation1 [shape = 'u32[144,128]{1,0:T(1,128)}', space=vmem, size = 0x12000, scoped, tag = 'internal scratch']
  %s0 = inlined_call_operand.hbm [shape: f32[8,32], index: 0, kind: input, shape index: {}]
  %s1 = inlined_call_operand.hbm [shape: f32[32,384], index: 1, kind: input, shape index: {}]
  %s2 = inlined_call_operand.vmem [shape: f32[1,384], index: 2, kind: input, shape index: {}]
  %s3 = inlined_call_operand.hbm [shape: f32[8,128], index: 3, kind: output, shape index: {}]
  %s4 = sld [smem:[#allocation0]]
  $region30: #{tpu_custom_call.1} parent=0
    _
  %s6 = ssub.s32 1, %s4
  %s7 = scalar_select 0, %s6, %s4
  $region1: #{tpu_custom_call.1} parent=0
    #allocation2 [shape = 'u8[4096]{0}', space=vmem, size = 0x1000, scoped, tag = 'input window, operand 0, single buffered']
    #allocation3 [shape = 's32[1]{0}', space=sflag, size = 0x4, scoped, tag = 'scoped memory for tpu_custom_call.1']
    #allocation4 [shape = 's32[1]{0}', space=sflag, size = 0x4, scoped, tag = 'scoped memory for tpu_custom_call.1']
    #allocation5 [shape = 'u8[49152]{0}', space=vmem, size = 0xc000, scoped, tag = 'input window, operand 1, single buffered']
    #allocation6 [shape = 's32[1]{0}', space=sflag, size = 0x4, scoped, tag = 'scoped memory for tpu_custom_call.1']
    #allocation7 [shape = 'u8[4096]{0}', space=vmem, size = 0x1000, scoped, tag = 'output window, operand 0, single buffered']
    %8 = vsyncpa [#allocation3], 0
    %9 = vsyncpa [#allocation6], 0
    %10 = vsyncpa [#allocation4], 0
    // Predicated region
    $region2: #{tpu_custom_call.1} parent=1 // pred_check
      _
    $region3: #{tpu_custom_call.1} parent=1 // pred_check_branch
      %12 = sbr.rel (0) target = $region5
    $region4: #{tpu_custom_call.1} parent=1 // pred_region
      %s14 = ssub.s32 128, 128
      %15 = vsyncadd [#allocation3], %s14
      %s17 = sshll.u32 [#allocation2], 4
      %s18 = int_to_ptr.vmem [resolvable:$true] %s17
      %20 = dma.hbm_to_vmem [thread:$0]  %s0, 128, %s18, [#allocation3]
    $region5: #{tpu_custom_call.1} parent=1 // pred_fallthru
      _
    // Predicated region
    $region6: #{tpu_custom_call.1} parent=1 // pred_check
      _
    $region7: #{tpu_custom_call.1} parent=1 // pred_check_branch
      %22 = sbr.rel (0) target = $region9
    $region8: #{tpu_custom_call.1} parent=1 // pred_region
      %s24 = ssub.s32 1536, 1536
      %25 = vsyncadd [#allocation6], %s24
      %s26 = sshll.u32 [#allocation5], 4
      %s27 = int_to_ptr.vmem [resolvable:$true] %s26
      %32 = dma.hbm_to_vmem [thread:$0]  %s1, 1536, %s27, [#allocation6], 384, 384, 24
    $region9: #{tpu_custom_call.1} parent=1 // pred_fallthru
      _
    // Predicated region
    $region10: #{tpu_custom_call.1} parent=1 // pred_check
      _
    $region11: #{tpu_custom_call.1} parent=1 // pred_check_branch
      %34 = sbr.rel (0) target = $region13
    $region12: #{tpu_custom_call.1} parent=1 // pred_region
      _
    $region13: #{tpu_custom_call.1} parent=1 // pred_fallthru
      _
    // Predicated region
    $region14: #{tpu_custom_call.1} parent=1 // pred_check
      _
    $region15: #{tpu_custom_call.1} parent=1 // pred_check_branch
      %36 = sbr.rel (0) target = $region17
    $region16: #{tpu_custom_call.1} parent=1 // pred_region
      %37 = dma.done [#allocation3], 128
    $region17: #{tpu_custom_call.1} parent=1 // pred_fallthru
      _
    // Predicated region
    $region18: #{tpu_custom_call.1} parent=1 // pred_check
      _
    $region19: #{tpu_custom_call.1} parent=1 // pred_check_branch
      %39 = sbr.rel (0) target = $region21
    $region20: #{tpu_custom_call.1} parent=1 // pred_region
      %40 = dma.done [#allocation6], 1536
    $region21: #{tpu_custom_call.1} parent=1 // pred_fallthru
      _
    %v41 = vld [vmem:[#allocation2] sm:$0xff]
    %v42 = vld [vmem:[#allocation5] sm:$0xff]
    %v43 = vld [vmem:[#allocation5 + $0x8] sm:$0xff]
    %v44 = vld [vmem:[#allocation5 + $0x10] sm:$0xff]
    %v45 = vld [vmem:[#allocation5 + $0x18] sm:$0xff]
    %v46 = vld [vmem:[#allocation5 + $0x20] sm:$0xff]
    %v47 = vld [vmem:[#allocation5 + $0x28] sm:$0xff]
    %v48 = vld [vmem:[#allocation5 + $0x30] sm:$0xff]
    %v49 = vld [vmem:[#allocation5 + $0x38] sm:$0xff]
    %v50 = vld [vmem:[#allocation5 + $0x40] sm:$0xff]
    %v51 = vld [vmem:[#allocation5 + $0x48] sm:$0xff]
    %v52 = vld [vmem:[#allocation5 + $0x50] sm:$0xff]
    %v53 = vld [vmem:[#allocation5 + $0x58] sm:$0xff]
    %v54 = vld [vmem:[%s2] sm:$0x7]
    %v56 = vlaneseq
    %v57 = vshrl.u32 %v56, 7
    %v58 = vsub.s32 0, %v57
    %v59 = vrot.slane %v54, %v58
    %v60 = vlaneseq
    %v61 = vshrl.u32 %v60, 7
    %v62 = vsub.s32 1, %v61
    %v63 = vrot.slane %v54, %v62
    %v64 = vlaneseq
    %v65 = vshrl.u32 %v64, 7
    %v66 = vsub.s32 2, %v65
    %v67 = vrot.slane %v54, %v66
    %vm71 = vcmask 261120
    %v73 = vsel %vm71, %v41, 0
    %75 = vmatprep.subr.mxu0 %v43
    %76 = vmatpush1.msra.mxu0 %v42
    %77 = vmatprep.subr.mxu0 %v46
    %78 = vmatpush1.msra.mxu0 %v45
    %79 = vmatprep.subr.mxu0 %v49
    %80 = vmatpush1.msra.mxu0 %v48
    %81 = vmatprep.subr.mxu0 %v52
    %82 = vmatpush1.msra.mxu0 %v51
    %83 = vmatprep.subr.mxu0 0.0
    %84 = vmatpush1.msra.mxu0 0.0
    %85 = vmatprep.subr.mxu0 0.0
    %86 = vmatpush1.msra.mxu0 0.0
    %87 = vmatprep.subr.mxu0 0.0
    %88 = vmatpush1.msra.mxu0 0.0
    %89 = vmatprep.subr.mxu0 0.0
    %90 = vmatpush1.msra.mxu0 0.0
    %91 = vmatprep.subr.mxu0 0.0
    %92 = vmatpush1.msra.mxu0 0.0
    %93 = vmatprep.subr.mxu0 0.0
    %94 = vmatpush1.msra.mxu0 0.0
    %95 = vmatprep.subr.mxu0 0.0
    %96 = vmatpush1.msra.mxu0 0.0
    %97 = vmatprep.subr.mxu0 0.0
    %98 = vmatpush1.msra.mxu0 0.0
    %99 = vmatprep.subr.mxu0 0.0
    %100 = vmatpush1.msra.mxu0 0.0
    %101 = vmatprep.subr.mxu0 0.0
    %102 = vmatpush1.msra.mxu0 0.0
    %103 = vmatprep.subr.mxu0 0.0
    %104 = vmatpush1.msra.mxu0 0.0
    %105 = vmatprep.subr.mxu0 0.0
    %106 = vmatpush1.msra.mxu0 0.0
    %107 = vmatprep.subr.mxu0 0.0
    %108 = vmatpush1.msra.mxu0 0.0
    %109 = vmatprep.subr.mxu0 0.0
    %110 = vmatpush1.msra.mxu0 0.0
    %111 = vmatprep.subr.mxu0 0.0
    %112 = vmatpush1.msra.mxu0 0.0
    %113 = vmatprep.subr.mxu0 0.0
    %114 = vmatpush1.msra.mxu0 0.0
    %115 = vmatprep.subr.mxu0 0.0
    %116 = vmatpush1.msra.mxu0 0.0
    %117 = vmatprep.subr.mxu0 0.0
    %118 = vmatpush1.msra.mxu0 0.0
    %119 = vmatprep.subr.mxu0 0.0
    %120 = vmatpush1.msra.mxu0 0.0
    %121 = vmatprep.subr.mxu0 0.0
    %122 = vmatpush1.msra.mxu0 0.0
    %123 = vmatprep.subr.mxu0 0.0
    %124 = vmatpush1.msra.mxu0 0.0
    %125 = vmatprep.subr.mxu0 0.0
    %126 = vmatpush1.msra.mxu0 0.0
    %127 = vmatprep.subr.mxu0 0.0
    %128 = vmatpush1.msra.mxu0 0.0
    %129 = vmatprep.subr.mxu0 0.0
    %130 = vmatpush1.msra.mxu0 0.0
    %131 = vmatprep.subr.mxu0 0.0
    %132 = vmatpush1.msra.mxu0 0.0
    %133 = vmatprep.subr.mxu0 0.0
    %134 = vmatpush1.msra.mxu0 0.0
    %135 = vmatprep.subr.mxu0 0.0
    %136 = vmatpush1.msra.mxu0 0.0
    %137 = vmatprep.subr.mxu0 0.0
    %138 = vmatpush1.msra.mxu0 0.0
    %139 = vmatprep.mubr.f32.mxu0 0.0
    %140 = vmatmul.mubr.f32.gmra.mrb[0].mxu0 %v73
    %v141 = vpop.f32.mrb[0].mxu0
    %v142 = vadd.f32 %v59, %v141
    %v143 = vpop.f32.mrb[0].mxu0
    %v144 = vadd.f32 %v63, %v143
    %145 = vdwg.mxu0
    %146 = vmatprep.subr.mxu0 0.0
    %147 = vmatpush1.msra.mxu0 %v44
    %148 = vmatprep.subr.mxu0 0.0
    %149 = vmatpush1.msra.mxu0 %v47
    %150 = vmatprep.subr.mxu0 0.0
    %151 = vmatpush1.msra.mxu0 %v50
    %152 = vmatprep.subr.mxu0 0.0
    %153 = vmatpush1.msra.mxu0 %v53
    %154 = vmatprep.subr.mxu0 0.0
    %155 = vmatpush1.msra.mxu0 0.0
    %156 = vmatprep.subr.mxu0 0.0
    %157 = vmatpush1.msra.mxu0 0.0
    %158 = vmatprep.subr.mxu0 0.0
    %159 = vmatpush1.msra.mxu0 0.0
    %160 = vmatprep.subr.mxu0 0.0
    %161 = vmatpush1.msra.mxu0 0.0
    %162 = vmatprep.subr.mxu0 0.0
    %163 = vmatpush1.msra.mxu0 0.0
    %164 = vmatprep.subr.mxu0 0.0
    %165 = vmatpush1.msra.mxu0 0.0
    %166 = vmatprep.subr.mxu0 0.0
    %167 = vmatpush1.msra.mxu0 0.0
    %168 = vmatprep.subr.mxu0 0.0
    %169 = vmatpush1.msra.mxu0 0.0
    %170 = vmatprep.subr.mxu0 0.0
    %171 = vmatpush1.msra.mxu0 0.0
    %172 = vmatprep.subr.mxu0 0.0
    %173 = vmatpush1.msra.mxu0 0.0
    %174 = vmatprep.subr.mxu0 0.0
    %175 = vmatpush1.msra.mxu0 0.0
    %176 = vmatprep.subr.mxu0 0.0
    %177 = vmatpush1.msra.mxu0 0.0
    %178 = vmatprep.subr.mxu0 0.0
    %179 = vmatpush1.msra.mxu0 0.0
    %180 = vmatprep.subr.mxu0 0.0
    %181 = vmatpush1.msra.mxu0 0.0
    %182 = vmatprep.subr.mxu0 0.0
    %183 = vmatpush1.msra.mxu0 0.0
    %184 = vmatprep.subr.mxu0 0.0
    %185 = vmatpush1.msra.mxu0 0.0
    %186 = vmatprep.subr.mxu0 0.0
    %187 = vmatpush1.msra.mxu0 0.0
    %188 = vmatprep.subr.mxu0 0.0
    %189 = vmatpush1.msra.mxu0 0.0
    %190 = vmatprep.subr.mxu0 0.0
    %191 = vmatpush1.msra.mxu0 0.0
    %192 = vmatprep.subr.mxu0 0.0
    %193 = vmatpush1.msra.mxu0 0.0
    %194 = vmatprep.subr.mxu0 0.0
    %195 = vmatpush1.msra.mxu0 0.0
    %196 = vmatprep.subr.mxu0 0.0
    %197 = vmatpush1.msra.mxu0 0.0
    %198 = vmatprep.subr.mxu0 0.0
    %199 = vmatpush1.msra.mxu0 0.0
    %200 = vmatprep.subr.mxu0 0.0
    %201 = vmatpush1.msra.mxu0 0.0
    %202 = vmatprep.subr.mxu0 0.0
    %203 = vmatpush1.msra.mxu0 0.0
    %204 = vmatprep.subr.mxu0 0.0
    %205 = vmatpush1.msra.mxu0 0.0
    %206 = vmatprep.subr.mxu0 0.0
    %207 = vmatpush1.msra.mxu0 0.0
    %208 = vmatprep.subr.mxu0 0.0
    %209 = vmatpush1.msra.mxu0 0.0
    %210 = vmatprep.mubr.f32.mxu0 0.0
    %211 = vmatmul.mubr.f32.gmra.mrb[0].mxu0 %v73
    %v212 = vpop.f32.mrb[0].mxu0
    %v213 = vadd.f32 %v67, %v212
    %v214 = vpop.f32.mrb[0].mxu0
    %215 = vdwg.mxu0
    %216 = vmax.xlane.f32.xlu0 %v142
    %v217 = vpop.xlane.xlu0 %216
    %v218 = vsub.f32 %v142, %v217
    %v219 = vmul.f32 %v218, 1.442695
    %v220 = vpow.pop %v219
    %221 = vadd.xlane.f32.xlu0 %v220
    %v222 = vpop.xlane.xlu0 %221
    %v223 = vrcp.pop %v222
    %v224 = vmul.f32 %v220, %v223
    %225 = vmax.xlane.f32.xlu0 %v144
    %v226 = vpop.xlane.xlu0 %225
    %v227 = vsub.f32 %v144, %v226
    %v228 = vmul.f32 %v227, 1.442695
    %v229 = vpow.pop %v228
    %230 = vadd.xlane.f32.xlu0 %v229
    %v231 = vpop.xlane.xlu0 %230
    %v232 = vrcp.pop %v231
    %v233 = vmul.f32 %v229, %v232
    %v234 = vadd.f32 %v224, %v233
    %235 = vmax.xlane.f32.xlu0 %v213
    %v236 = vpop.xlane.xlu0 %235
    %v237 = vsub.f32 %v213, %v236
    %v238 = vmul.f32 %v237, 1.442695
    %v239 = vpow.pop %v238
    %240 = vadd.xlane.f32.xlu0 %v239
    %v241 = vpop.xlane.xlu0 %240
    %v242 = vrcp.pop %v241
    %v243 = vmul.f32 %v239, %v242
    %v244 = vadd.f32 %v234, %v243
    %v245 = vmul.f32 %v244, 0.33333334
    %246 = vst [vmem:[#allocation7] sm:$0xff] %v245
    // Predicated region
    $region22: #{tpu_custom_call.1} parent=1 // pred_check
      _
    $region23: #{tpu_custom_call.1} parent=1 // pred_check_branch
      %248 = sbr.rel (0) target = $region25
    $region24: #{tpu_custom_call.1} parent=1 // pred_region
      %s250 = ssub.s32 128, 128
      %251 = vsyncadd [#allocation4], %s250
      %s253 = sshll.u32 [#allocation7], 4
      %s254 = int_to_ptr.vmem [resolvable:$true] %s253
      %256 = dma.vmem_to_hbm [thread:$0]  %s254, 128, %s3, [#allocation4]
    $region25: #{tpu_custom_call.1} parent=1 // pred_fallthru
      _
    // Predicated region
    $region26: #{tpu_custom_call.1} parent=1 // pred_check
      _
    $region27: #{tpu_custom_call.1} parent=1 // pred_check_branch
      %258 = sbr.rel (0) target = $region29
    $region28: #{tpu_custom_call.1} parent=1 // pred_region
      %259 = dma.done [#allocation4], 128
    $region29: #{tpu_custom_call.1} parent=1 // pred_fallthru
      _
    %260 = vsyncpa [#allocation3], 1
    %261 = vsyncpa [#allocation6], 1
    %262 = vsyncpa [#allocation4], 1

// kernel: tpu_custom_call.1
$region0: #{tpu_custom_call.1}
  #allocation0 [shape = 'u32[]', space=smem, size = 0x4, offset = 0x4, fixed_abs, tag = 'smem constant byte address 0x4 - core index']
  #allocation1 [shape = 'u32[144,128]{1,0:T(1,128)}', space=vmem, size = 0x12000, scoped, tag = 'internal scratch']
  %s0 = inlined_call_operand.hbm [shape: f32[8,32], index: 0, kind: input, shape index: {}]
  %s1 = inlined_call_operand.hbm [shape: f32[32,384], index: 1, kind: input, shape index: {}]
  %s2 = inlined_call_operand.vmem [shape: f32[1,384], index: 2, kind: input, shape index: {}]
  %s3 = inlined_call_operand.hbm [shape: f32[8,128], index: 3, kind: output, shape index: {}]
  %s4 = sld [smem:[#allocation0]]
  $region30: #{tpu_custom_call.1} parent=0
    _
  %s6 = ssub.s32 1, %s4
  %s7 = scalar_select 0, %s6, %s4
  $region1: #{tpu_custom_call.1} parent=0
    #allocation2 [shape = 'u8[4096]{0}', space=vmem, size = 0x1000, scoped, tag = 'input window, operand 0, single buffered']
    #allocation3 [shape = 's32[1]{0}', space=sflag, size = 0x4, scoped, tag = 'scoped memory for tpu_custom_call.1']
    #allocation4 [shape = 's32[1]{0}', space=sflag, size = 0x4, scoped, tag = 'scoped memory for tpu_custom_call.1']
    #allocation5 [shape = 'u8[49152]{0}', space=vmem, size = 0xc000, scoped, tag = 'input window, operand 1, single buffered']
    #allocation6 [shape = 's32[1]{0}', space=sflag, size = 0x4, scoped, tag = 'scoped memory for tpu_custom_call.1']
    #allocation7 [shape = 'u8[4096]{0}', space=vmem, size = 0x1000, scoped, tag = 'output window, operand 0, single buffered']
    %8 = vsyncpa [#allocation3], 0
    %9 = vsyncpa [#allocation6], 0
    %10 = vsyncpa [#allocation4], 0
    // Predicated region
    $region2: #{tpu_custom_call.1} parent=1 // pred_check
      _
    $region3: #{tpu_custom_call.1} parent=1 // pred_check_branch
      %12 = sbr.rel (0) target = $region5
    $region4: #{tpu_custom_call.1} parent=1 // pred_region
      %s14 = ssub.s32 128, 128
      %15 = vsyncadd [#allocation3], %s14
      %s17 = sshll.u32 [#allocation2], 4
      %s18 = int_to_ptr.vmem [resolvable:$true] %s17
      %20 = dma.hbm_to_vmem [thread:$0]  %s0, 128, %s18, [#allocation3]
    $region5: #{tpu_custom_call.1} parent=1 // pred_fallthru
      _
    // Predicated region
    $region6: #{tpu_custom_call.1} parent=1 // pred_check
      _
    $region7: #{tpu_custom_call.1} parent=1 // pred_check_branch
      %22 = sbr.rel (0) target = $region9
    $region8: #{tpu_custom_call.1} parent=1 // pred_region
      %s24 = ssub.s32 1536, 1536
      %25 = vsyncadd [#allocation6], %s24
      %s26 = sshll.u32 [#allocation5], 4
      %s27 = int_to_ptr.vmem [resolvable:$true] %s26
      %32 = dma.hbm_to_vmem [thread:$0]  %s1, 1536, %s27, [#allocation6], 384, 384, 24
    $region9: #{tpu_custom_call.1} parent=1 // pred_fallthru
      _
    // Predicated region
    $region10: #{tpu_custom_call.1} parent=1 // pred_check
      _
    $region11: #{tpu_custom_call.1} parent=1 // pred_check_branch
      %34 = sbr.rel (0) target = $region13
    $region12: #{tpu_custom_call.1} parent=1 // pred_region
      _
    $region13: #{tpu_custom_call.1} parent=1 // pred_fallthru
      _
    // Predicated region
    $region14: #{tpu_custom_call.1} parent=1 // pred_check
      _
    $region15: #{tpu_custom_call.1} parent=1 // pred_check_branch
      %36 = sbr.rel (0) target = $region17
    $region16: #{tpu_custom_call.1} parent=1 // pred_region
      %37 = dma.done [#allocation3], 128
    $region17: #{tpu_custom_call.1} parent=1 // pred_fallthru
      _
    // Predicated region
    $region18: #{tpu_custom_call.1} parent=1 // pred_check
      _
    $region19: #{tpu_custom_call.1} parent=1 // pred_check_branch
      %39 = sbr.rel (0) target = $region21
    $region20: #{tpu_custom_call.1} parent=1 // pred_region
      %40 = dma.done [#allocation6], 1536
    $region21: #{tpu_custom_call.1} parent=1 // pred_fallthru
      _
    %v41 = vld [vmem:[#allocation2] sm:$0xff]
    %v42 = vld [vmem:[#allocation5] sm:$0xff]
    %v43 = vld [vmem:[#allocation5 + $0x8] sm:$0xff]
    %v44 = vld [vmem:[#allocation5 + $0x10] sm:$0xff]
    %v45 = vld [vmem:[#allocation5 + $0x18] sm:$0xff]
    %v46 = vld [vmem:[#allocation5 + $0x20] sm:$0xff]
    %v47 = vld [vmem:[#allocation5 + $0x28] sm:$0xff]
    %v48 = vld [vmem:[#allocation5 + $0x30] sm:$0xff]
    %v49 = vld [vmem:[#allocation5 + $0x38] sm:$0xff]
    %v50 = vld [vmem:[#allocation5 + $0x40] sm:$0xff]
    %v51 = vld [vmem:[#allocation5 + $0x48] sm:$0xff]
    %v52 = vld [vmem:[#allocation5 + $0x50] sm:$0xff]
    %v53 = vld [vmem:[#allocation5 + $0x58] sm:$0xff]
    %v54 = vld [vmem:[%s2] sm:$0x7]
    %v56 = vlaneseq
    %v57 = vshrl.u32 %v56, 7
    %v58 = vsub.s32 0, %v57
    %v59 = vrot.slane %v54, %v58
    %v60 = vlaneseq
    %v61 = vshrl.u32 %v60, 7
    %v62 = vsub.s32 1, %v61
    %v63 = vrot.slane %v54, %v62
    %v64 = vlaneseq
    %v65 = vshrl.u32 %v64, 7
    %v66 = vsub.s32 2, %v65
    %v67 = vrot.slane %v54, %v66
    %vm71 = vcmask 261120
    %v73 = vsel %vm71, %v41, 0
    %75 = vmatprep.subr.mxu0 %v43
    %76 = vmatpush1.msra.mxu0 %v42
    %77 = vmatprep.subr.mxu0 %v46
    %78 = vmatpush1.msra.mxu0 %v45
    %79 = vmatprep.subr.mxu0 %v49
    %80 = vmatpush1.msra.mxu0 %v48
    %81 = vmatprep.subr.mxu0 %v52
    %82 = vmatpush1.msra.mxu0 %v51
    %83 = vmatprep.subr.mxu0 0.0
    %84 = vmatpush1.msra.mxu0 0.0
    %85 = vmatprep.subr.mxu0 0.0
    %86 = vmatpush1.msra.mxu0 0.0
    %87 = vmatprep.subr.mxu0 0.0
    %88 = vmatpush1.msra.mxu0 0.0
    %89 = vmatprep.subr.mxu0 0.0
    %90 = vmatpush1.msra.mxu0 0.0
    %91 = vmatprep.subr.mxu0 0.0
    %92 = vmatpush1.msra.mxu0 0.0
    %93 = vmatprep.subr.mxu0 0.0
    %94 = vmatpush1.msra.mxu0 0.0
    %95 = vmatprep.subr.mxu0 0.0
    %96 = vmatpush1.msra.mxu0 0.0
    %97 = vmatprep.subr.mxu0 0.0
    %98 = vmatpush1.msra.mxu0 0.0
    %99 = vmatprep.subr.mxu0 0.0
    %100 = vmatpush1.msra.mxu0 0.0
    %101 = vmatprep.subr.mxu0 0.0
    %102 = vmatpush1.msra.mxu0 0.0
    %103 = vmatprep.subr.mxu0 0.0
    %104 = vmatpush1.msra.mxu0 0.0
    %105 = vmatprep.subr.mxu0 0.0
    %106 = vmatpush1.msra.mxu0 0.0
    %107 = vmatprep.subr.mxu0 0.0
    %108 = vmatpush1.msra.mxu0 0.0
    %109 = vmatprep.subr.mxu0 0.0
    %110 = vmatpush1.msra.mxu0 0.0
    %111 = vmatprep.subr.mxu0 0.0
    %112 = vmatpush1.msra.mxu0 0.0
    %113 = vmatprep.subr.mxu0 0.0
    %114 = vmatpush1.msra.mxu0 0.0
    %115 = vmatprep.subr.mxu0 0.0
    %116 = vmatpush1.msra.mxu0 0.0
    %117 = vmatprep.subr.mxu0 0.0
    %118 = vmatpush1.msra.mxu0 0.0
    %119 = vmatprep.subr.mxu0 0.0
    %120 = vmatpush1.msra.mxu0 0.0
    %121 = vmatprep.subr.mxu0 0.0
    %122 = vmatpush1.msra.mxu0 0.0
    %123 = vmatprep.subr.mxu0 0.0
    %124 = vmatpush1.msra.mxu0 0.0
    %125 = vmatprep.subr.mxu0 0.0
    %126 = vmatpush1.msra.mxu0 0.0
    %127 = vmatprep.subr.mxu0 0.0
    %128 = vmatpush1.msra.mxu0 0.0
    %129 = vmatprep.subr.mxu0 0.0
    %130 = vmatpush1.msra.mxu0 0.0
    %131 = vmatprep.subr.mxu0 0.0
    %132 = vmatpush1.msra.mxu0 0.0
    %133 = vmatprep.subr.mxu0 0.0
    %134 = vmatpush1.msra.mxu0 0.0
    %135 = vmatprep.subr.mxu0 0.0
    %136 = vmatpush1.msra.mxu0 0.0
    %137 = vmatprep.subr.mxu0 0.0
    %138 = vmatpush1.msra.mxu0 0.0
    %139 = vmatprep.mubr.f32.mxu0 0.0
    %140 = vmatmul.mubr.f32.gmra.mrb[0].mxu0 %v73
    %v141 = vpop.f32.mrb[0].mxu0
    %v142 = vadd.f32 %v59, %v141
    %v143 = vpop.f32.mrb[0].mxu0
    %v144 = vadd.f32 %v63, %v143
    %145 = vdwg.mxu0
    %146 = vmatprep.subr.mxu0 0.0
    %147 = vmatpush1.msra.mxu0 %v44
    %148 = vmatprep.subr.mxu0 0.0
    %149 = vmatpush1.msra.mxu0 %v47
    %150 = vmatprep.subr.mxu0 0.0
    %151 = vmatpush1.msra.mxu0 %v50
    %152 = vmatprep.subr.mxu0 0.0
    %153 = vmatpush1.msra.mxu0 %v53
    %154 = vmatprep.subr.mxu0 0.0
    %155 = vmatpush1.msra.mxu0 0.0
    %156 = vmatprep.subr.mxu0 0.0
    %157 = vmatpush1.msra.mxu0 0.0
    %158 = vmatprep.subr.mxu0 0.0
    %159 = vmatpush1.msra.mxu0 0.0
    %160 = vmatprep.subr.mxu0 0.0
    %161 = vmatpush1.msra.mxu0 0.0
    %162 = vmatprep.subr.mxu0 0.0
    %163 = vmatpush1.msra.mxu0 0.0
    %164 = vmatprep.subr.mxu0 0.0
    %165 = vmatpush1.msra.mxu0 0.0
    %166 = vmatprep.subr.mxu0 0.0
    %167 = vmatpush1.msra.mxu0 0.0
    %168 = vmatprep.subr.mxu0 0.0
    %169 = vmatpush1.msra.mxu0 0.0
    %170 = vmatprep.subr.mxu0 0.0
    %171 = vmatpush1.msra.mxu0 0.0
    %172 = vmatprep.subr.mxu0 0.0
    %173 = vmatpush1.msra.mxu0 0.0
    %174 = vmatprep.subr.mxu0 0.0
    %175 = vmatpush1.msra.mxu0 0.0
    %176 = vmatprep.subr.mxu0 0.0
    %177 = vmatpush1.msra.mxu0 0.0
    %178 = vmatprep.subr.mxu0 0.0
    %179 = vmatpush1.msra.mxu0 0.0
    %180 = vmatprep.subr.mxu0 0.0
    %181 = vmatpush1.msra.mxu0 0.0
    %182 = vmatprep.subr.mxu0 0.0
    %183 = vmatpush1.msra.mxu0 0.0
    %184 = vmatprep.subr.mxu0 0.0
    %185 = vmatpush1.msra.mxu0 0.0
    %186 = vmatprep.subr.mxu0 0.0
    %187 = vmatpush1.msra.mxu0 0.0
    %188 = vmatprep.subr.mxu0 0.0
    %189 = vmatpush1.msra.mxu0 0.0
    %190 = vmatprep.subr.mxu0 0.0
    %191 = vmatpush1.msra.mxu0 0.0
    %192 = vmatprep.subr.mxu0 0.0
    %193 = vmatpush1.msra.mxu0 0.0
    %194 = vmatprep.subr.mxu0 0.0
    %195 = vmatpush1.msra.mxu0 0.0
    %196 = vmatprep.subr.mxu0 0.0
    %197 = vmatpush1.msra.mxu0 0.0
    %198 = vmatprep.subr.mxu0 0.0
    %199 = vmatpush1.msra.mxu0 0.0
    %200 = vmatprep.subr.mxu0 0.0
    %201 = vmatpush1.msra.mxu0 0.0
    %202 = vmatprep.subr.mxu0 0.0
    %203 = vmatpush1.msra.mxu0 0.0
    %204 = vmatprep.subr.mxu0 0.0
    %205 = vmatpush1.msra.mxu0 0.0
    %206 = vmatprep.subr.mxu0 0.0
    %207 = vmatpush1.msra.mxu0 0.0
    %208 = vmatprep.subr.mxu0 0.0
    %209 = vmatpush1.msra.mxu0 0.0
    %210 = vmatprep.mubr.f32.mxu0 0.0
    %211 = vmatmul.mubr.f32.gmra.mrb[0].mxu0 %v73
    %v212 = vpop.f32.mrb[0].mxu0
    %v213 = vadd.f32 %v67, %v212
    %v214 = vpop.f32.mrb[0].mxu0
    %215 = vdwg.mxu0
    %216 = vmax.xlane.f32.xlu0 %v142
    %v217 = vpop.xlane.xlu0 %216
    %v218 = vsub.f32 %v142, %v217
    %v219 = vmul.f32 %v218, 1.442695
    %v220 = vpow.pop %v219
    %221 = vadd.xlane.f32.xlu0 %v220
    %v222 = vpop.xlane.xlu0 %221
    %v223 = vrcp.pop %v222
    %v224 = vmul.f32 %v220, %v223
    %225 = vmax.xlane.f32.xlu0 %v144
    %v226 = vpop.xlane.xlu0 %225
    %v227 = vsub.f32 %v144, %v226
    %v228 = vmul.f32 %v227, 1.442695
    %v229 = vpow.pop %v228
    %230 = vadd.xlane.f32.xlu0 %v229
    %v231 = vpop.xlane.xlu0 %230
    %v232 = vrcp.pop %v231
    %v233 = vmul.f32 %v229, %v232
    %v234 = vadd.f32 %v224, %v233
    %235 = vmax.xlane.f32.xlu0 %v213
    %v236 = vpop.xlane.xlu0 %235
    %v237 = vsub.f32 %v213, %v236
    %v238 = vmul.f32 %v237, 1.442695
    %v239 = vpow.pop %v238
    %240 = vadd.xlane.f32.xlu0 %v239
    %v241 = vpop.xlane.xlu0 %240
    %v242 = vrcp.pop %v241
    %v243 = vmul.f32 %v239, %v242
    %v244 = vadd.f32 %v234, %v243
    %v245 = vmul.f32 %v244, 0.33333334
    %246 = vst [vmem:[#allocation7] sm:$0xff] %v245
    // Predicated region
    $region22: #{tpu_custom_call.1} parent=1 // pred_check
      _
    $region23: #{tpu_custom_call.1} parent=1 // pred_check_branch
      %248 = sbr.rel (0) target = $region25
    $region24: #{tpu_custom_call.1} parent=1 // pred_region
      %s250 = ssub.s32 128, 128
      %251 = vsyncadd [#allocation4], %s250
      %s253 = sshll.u32 [#allocation7], 4
      %s254 = int_to_ptr.vmem [resolvable:$true] %s253
      %256 = dma.vmem_to_hbm [thread:$0]  %s254, 128, %s3, [#allocation4]
    $region25: #{tpu_custom_call.1} parent=1 // pred_fallthru
      _
    // Predicated region
    $region26: #{tpu_custom_call.1} parent=1 // pred_check
      _
    $region27: #{tpu_custom_call.1} parent=1 // pred_check_branch
      %258 = sbr.rel (0) target = $region29
    $region28: #{tpu_custom_call.1} parent=1 // pred_region
      %259 = dma.done [#allocation4], 128
    $region29: #{tpu_custom_call.1} parent=1 // pred_fallthru
      _
    %260 = vsyncpa [#allocation3], 1
    %261 = vsyncpa [#allocation6], 1
    %262 = vsyncpa [#allocation4], 1

</llo_original>
